<compile_context>
chip_gen: v7x
topology: tpu7x:2x2x1
jax: 0.10.0
libtpu: 0.0.40
codegen_flags: <defaults>
</compile_context>

<pallas_src>
import functools

import jax
import jax.numpy as jnp
from jax.experimental import pallas as pl
from jax.experimental.pallas import tpu as pltpu

LANE = 128          # lane width / padded feature dimension for every layer
NUM_LAYERS = 4


def mlp_kernel(x_ref, w_ref, b_ref, o_ref, *, in_dim):
    """Fused 4-layer MLP forward on one batch tile.

    x_ref: (tile_b, in_dim)   f32
    w_ref: (4, 128, 128)      f32, layer l weight at [l, :in_l, :out_l] = W_l.T
    b_ref: (4, 1, 128)        f32, layer l bias at   [l, 0, :out_l]
    o_ref: (tile_b, 128)      f32, valid result in column 0
    """
    x = x_ref[...]                                   # (tb, in_dim)

    # fc1 + relu  (static slice: only the first in_dim rows of W1 carry data)
    w1 = w_ref[0, :in_dim, :]                        # (in_dim, 128)
    h = jnp.dot(x, w1, preferred_element_type=jnp.float32) + b_ref[0]
    h = jnp.maximum(h, 0.0)

    # fc2 + relu  (padded rows of W2 are zero, padded cols of h are zero)
    h = jnp.dot(h, w_ref[1], preferred_element_type=jnp.float32) + b_ref[1]
    h = jnp.maximum(h, 0.0)

    # fc3 + relu
    h = jnp.dot(h, w_ref[2], preferred_element_type=jnp.float32) + b_ref[2]
    h = jnp.maximum(h, 0.0)

    # fc4 + sigmoid (tanh form -> single EUP op, numerically safe)
    h = jnp.dot(h, w_ref[3], preferred_element_type=jnp.float32) + b_ref[3]
    o_ref[...] = (0.5 * (jnp.tanh(0.5 * h) + 1.0)).astype(o_ref.dtype)


def pack_params(params):
    """One-time packing of PyTorch-convention params into lane-padded slabs.

    params: dict with w{i}: (out, in), b{i}: (out,) for i in 1..4.
    Returns (w_slab (4,128,128), b_slab (4,1,128)).  Cache these alongside the
    params; the per-call forward path then has zero layout ops.
    """
    w_slab = jnp.zeros((NUM_LAYERS, LANE, LANE), jnp.float32)
    b_slab = jnp.zeros((NUM_LAYERS, 1, LANE), jnp.float32)
    for l in range(NUM_LAYERS):
        w = params[f"w{l + 1}"]          # (out, in)
        b = params[f"b{l + 1}"]          # (out,)
        out_d, in_d = w.shape
        w_slab = w_slab.at[l, :in_d, :out_d].set(w.T.astype(jnp.float32))
        b_slab = b_slab.at[l, 0, :out_d].set(b.astype(jnp.float32))
    return w_slab, b_slab


@jax.jit
def neural_network_forward(x, w_slab, b_slab):
    """Forward pass. x: (batch, in_dim) f32. Returns (batch, 1) f32."""
    batch, in_dim = x.shape
    assert batch % 8 == 0, "keep batch a multiple of 8 (f32 sublane)"

    # Batch tile: one grid point per tile; "parallel" lets v7x split tiles
    # across its two TensorCores when the batch is large.
    tile_b = batch if batch <= 256 else 256
    assert batch % tile_b == 0
    grid = (batch // tile_b,)

    kernel = functools.partial(mlp_kernel, in_dim=in_dim)

    out = pl.pallas_call(
        kernel,
        out_shape=jax.ShapeDtypeStruct((batch, LANE), x.dtype),
        grid_spec=pltpu.PrefetchScalarGridSpec(
            num_scalar_prefetch=0,
            grid=grid,
            in_specs=[
                pl.BlockSpec((tile_b, in_dim), lambda i: (i, 0)),
                pl.BlockSpec((NUM_LAYERS, LANE, LANE), lambda i: (0, 0, 0)),
                pl.BlockSpec((NUM_LAYERS, 1, LANE), lambda i: (0, 0, 0)),
            ],
            out_specs=pl.BlockSpec((tile_b, LANE), lambda i: (i, 0)),
        ),
        compiler_params=pltpu.CompilerParams(
            dimension_semantics=("parallel",)),
    )(x, w_slab, b_slab)

    # Lane-dense kernel output; the real scalar prediction lives in column 0.
    return out[:, :1]


def init_params(key, input_dim, units_1, hidden_units_1, hidden_units_2):
    """Deterministic init mirroring nn.Linear shapes (weight: (out, in))."""
    dims = [(units_1, input_dim),
            (hidden_units_1, units_1),
            (hidden_units_2, hidden_units_1),
            (1, hidden_units_2)]
    params = {}
    keys = jax.random.split(key, 2 * len(dims))
    for i, (out_d, in_d) in enumerate(dims):
        bound = 1.0 / jnp.sqrt(in_d)
        params[f"w{i + 1}"] = jax.random.uniform(
            keys[2 * i], (out_d, in_d), jnp.float32, -bound, bound)
        params[f"b{i + 1}"] = jax.random.uniform(
            keys[2 * i + 1], (out_d,), jnp.float32, -bound, bound)
    return params


if __name__ == "__main__":
    input_dim, units_1, hidden_units_1, hidden_units_2 = 32, 64, 32, 16
    batch = 8

    key = jax.random.PRNGKey(0)
    k_x, k_p = jax.random.split(key)
    x = jax.random.normal(k_x, (batch, input_dim), jnp.float32)
    params = init_params(k_p, input_dim, units_1, hidden_units_1, hidden_units_2)

    # One-time packing (cache these alongside the params in real use).
    w_slab, b_slab = pack_params(params)
    w_slab, b_slab = jax.block_until_ready((w_slab, b_slab))

    out = neural_network_forward(x, w_slab, b_slab)
    out = jax.block_until_ready(out)

    # Sanity check against a pure-JAX reference of the same math.
    def ref(x, p):
        h = jnp.maximum(x @ p["w1"].T + p["b1"], 0.0)
        h = jnp.maximum(h @ p["w2"].T + p["b2"], 0.0)
        h = jnp.maximum(h @ p["w3"].T + p["b3"], 0.0)
        return jax.nn.sigmoid(h @ p["w4"].T + p["b4"])

    expected = ref(x, params)
    assert out.shape == (batch, 1)
    assert jnp.allclose(out, expected, atol=1e-5, rtol=1e-5), (
        f"max abs err {jnp.max(jnp.abs(out - expected))}")

    print("KERNEL_OK")
</pallas_src>

<mosaic_0001>
module attributes {stable_mosaic.version = 11 : i64} {
  func.func @mlp_kernel(%arg0: i32, %arg1: memref<8x32xf32, #tpu.memory_space<vmem>>, %arg2: memref<4x128x128xf32, #tpu.memory_space<vmem>>, %arg3: memref<4x1x128xf32, #tpu.memory_space<vmem>>, %arg4: memref<8x128xf32, #tpu.memory_space<vmem>>) attributes {dimension_semantics = [#tpu.dimension_semantics<parallel>], iteration_bounds = array<i64: 1>, scalar_prefetch = 0 : i64, scratch_operands = 0 : i64, tpu.core_type = #tpu.core_type<tc>, window_params = [{transform_indices = @transform_0, window_bounds = array<i64: 8, 32>}, {pipeline_mode = #tpu.pipeline_mode<synchronous>, transform_indices = @transform_1, window_bounds = array<i64: 4, 128, 128>}, {pipeline_mode = #tpu.pipeline_mode<synchronous>, transform_indices = @transform_2, window_bounds = array<i64: 4, 1, 128>}, {transform_indices = @transform_3, window_bounds = array<i64: 8, 128>}]} {
    %c0 = arith.constant 0 : index
    %c0_0 = arith.constant 0 : index
    %0 = vector.load %arg1[%c0, %c0_0] : memref<8x32xf32, #tpu.memory_space<vmem>>, vector<8x32xf32>
    %c0_1 = arith.constant 0 : index
    %c0_2 = arith.constant 0 : index
    %c0_3 = arith.constant 0 : index
    %1 = vector.load %arg2[%c0_1, %c0_2, %c0_3] : memref<4x128x128xf32, #tpu.memory_space<vmem>>, vector<1x32x128xf32>
    %2 = vector.shape_cast %1 : vector<1x32x128xf32> to vector<32x128xf32>
    %cst = arith.constant dense<0.000000e+00> : vector<8x128xf32>
    %3 = tpu.matmul %0, %2, %cst {dimension_numbers = #tpu.dot_dimension_numbers<[1], [0], [0], [1], [0, 0, 1, 1], [], []>} : vector<8x32xf32>, vector<32x128xf32>, vector<8x128xf32> -> vector<8x128xf32>
    %c0_4 = arith.constant 0 : index
    %c0_5 = arith.constant 0 : index
    %c0_6 = arith.constant 0 : index
    %4 = vector.load %arg3[%c0_4, %c0_5, %c0_6] : memref<4x1x128xf32, #tpu.memory_space<vmem>>, vector<1x1x128xf32>
    %5 = vector.shape_cast %4 : vector<1x1x128xf32> to vector<1x128xf32>
    %6 = vector.broadcast %5 : vector<1x128xf32> to vector<8x128xf32>
    %7 = arith.addf %3, %6 : vector<8x128xf32>
    %cst_7 = arith.constant 0.000000e+00 : f32
    %8 = vector.broadcast %cst_7 : f32 to vector<8x128xf32>
    %9 = arith.maximumf %7, %8 : vector<8x128xf32>
    %c1 = arith.constant 1 : index
    %c0_8 = arith.constant 0 : index
    %c0_9 = arith.constant 0 : index
    %10 = vector.load %arg2[%c1, %c0_8, %c0_9] : memref<4x128x128xf32, #tpu.memory_space<vmem>>, vector<1x128x128xf32>
    %11 = vector.shape_cast %10 : vector<1x128x128xf32> to vector<128x128xf32>
    %cst_10 = arith.constant dense<0.000000e+00> : vector<8x128xf32>
    %12 = tpu.matmul %9, %11, %cst_10 {dimension_numbers = #tpu.dot_dimension_numbers<[1], [0], [0], [1], [0, 0, 1, 1], [], []>} : vector<8x128xf32>, vector<128x128xf32>, vector<8x128xf32> -> vector<8x128xf32>
    %c1_11 = arith.constant 1 : index
    %c0_12 = arith.constant 0 : index
    %c0_13 = arith.constant 0 : index
    %13 = vector.load %arg3[%c1_11, %c0_12, %c0_13] : memref<4x1x128xf32, #tpu.memory_space<vmem>>, vector<1x1x128xf32>
    %14 = vector.shape_cast %13 : vector<1x1x128xf32> to vector<1x128xf32>
    %15 = vector.broadcast %14 : vector<1x128xf32> to vector<8x128xf32>
    %16 = arith.addf %12, %15 : vector<8x128xf32>
    %cst_14 = arith.constant 0.000000e+00 : f32
    %17 = vector.broadcast %cst_14 : f32 to vector<8x128xf32>
    %18 = arith.maximumf %16, %17 : vector<8x128xf32>
    %c2 = arith.constant 2 : index
    %c0_15 = arith.constant 0 : index
    %c0_16 = arith.constant 0 : index
    %19 = vector.load %arg2[%c2, %c0_15, %c0_16] : memref<4x128x128xf32, #tpu.memory_space<vmem>>, vector<1x128x128xf32>
    %20 = vector.shape_cast %19 : vector<1x128x128xf32> to vector<128x128xf32>
    %cst_17 = arith.constant dense<0.000000e+00> : vector<8x128xf32>
    %21 = tpu.matmul %18, %20, %cst_17 {dimension_numbers = #tpu.dot_dimension_numbers<[1], [0], [0], [1], [0, 0, 1, 1], [], []>} : vector<8x128xf32>, vector<128x128xf32>, vector<8x128xf32> -> vector<8x128xf32>
    %c2_18 = arith.constant 2 : index
    %c0_19 = arith.constant 0 : index
    %c0_20 = arith.constant 0 : index
    %22 = vector.load %arg3[%c2_18, %c0_19, %c0_20] : memref<4x1x128xf32, #tpu.memory_space<vmem>>, vector<1x1x128xf32>
    %23 = vector.shape_cast %22 : vector<1x1x128xf32> to vector<1x128xf32>
    %24 = vector.broadcast %23 : vector<1x128xf32> to vector<8x128xf32>
    %25 = arith.addf %21, %24 : vector<8x128xf32>
    %cst_21 = arith.constant 0.000000e+00 : f32
    %26 = vector.broadcast %cst_21 : f32 to vector<8x128xf32>
    %27 = arith.maximumf %25, %26 : vector<8x128xf32>
    %c3 = arith.constant 3 : index
    %c0_22 = arith.constant 0 : index
    %c0_23 = arith.constant 0 : index
    %28 = vector.load %arg2[%c3, %c0_22, %c0_23] : memref<4x128x128xf32, #tpu.memory_space<vmem>>, vector<1x128x128xf32>
    %29 = vector.shape_cast %28 : vector<1x128x128xf32> to vector<128x128xf32>
    %cst_24 = arith.constant dense<0.000000e+00> : vector<8x128xf32>
    %30 = tpu.matmul %27, %29, %cst_24 {dimension_numbers = #tpu.dot_dimension_numbers<[1], [0], [0], [1], [0, 0, 1, 1], [], []>} : vector<8x128xf32>, vector<128x128xf32>, vector<8x128xf32> -> vector<8x128xf32>
    %c3_25 = arith.constant 3 : index
    %c0_26 = arith.constant 0 : index
    %c0_27 = arith.constant 0 : index
    %31 = vector.load %arg3[%c3_25, %c0_26, %c0_27] : memref<4x1x128xf32, #tpu.memory_space<vmem>>, vector<1x1x128xf32>
    %32 = vector.shape_cast %31 : vector<1x1x128xf32> to vector<1x128xf32>
    %33 = vector.broadcast %32 : vector<1x128xf32> to vector<8x128xf32>
    %34 = arith.addf %30, %33 : vector<8x128xf32>
    %cst_28 = arith.constant 5.000000e-01 : f32
    %35 = vector.broadcast %cst_28 : f32 to vector<8x128xf32>
    %36 = arith.mulf %35, %34 : vector<8x128xf32>
    %37 = math.tanh %36 : vector<8x128xf32>
    %cst_29 = arith.constant 1.000000e+00 : f32
    %38 = vector.broadcast %cst_29 : f32 to vector<8x128xf32>
    %39 = arith.addf %37, %38 : vector<8x128xf32>
    %cst_30 = arith.constant 5.000000e-01 : f32
    %40 = vector.broadcast %cst_30 : f32 to vector<8x128xf32>
    %41 = arith.mulf %40, %39 : vector<8x128xf32>
    %c0_31 = arith.constant 0 : index
    %c0_32 = arith.constant 0 : index
    %42 = vector.load %arg4[%c0_31, %c0_32] : memref<8x128xf32, #tpu.memory_space<vmem>>, vector<8x128xf32>
    tpu.vector_store %arg4[%c0_31, %c0_32], %41 {strides = array<i32>} : memref<8x128xf32, #tpu.memory_space<vmem>>, vector<8x128xf32>,
    return
  }
  func.func @transform_0(%arg0: i32) -> (i32, i32) {
    %c0_i32 = arith.constant 0 : i32
    %c0_i32_0 = arith.constant 0 : i32
    return %arg0, %c0_i32 : i32, i32
  }
  func.func @transform_1(%arg0: i32) -> (i32, i32, i32) {
    %c0_i32 = arith.constant 0 : i32
    %c0_i32_0 = arith.constant 0 : i32
    %c0_i32_1 = arith.constant 0 : i32
    %c0_i32_2 = arith.constant 0 : i32
    return %c0_i32, %c0_i32_0, %c0_i32_1 : i32, i32, i32
  }
  func.func @transform_2(%arg0: i32) -> (i32, i32, i32) {
    %c0_i32 = arith.constant 0 : i32
    %c0_i32_0 = arith.constant 0 : i32
    %c0_i32_1 = arith.constant 0 : i32
    %c0_i32_2 = arith.constant 0 : i32
    return %c0_i32, %c0_i32_0, %c0_i32_1 : i32, i32, i32
  }
  func.func @transform_3(%arg0: i32) -> (i32, i32) {
    %c0_i32 = arith.constant 0 : i32
    %c0_i32_0 = arith.constant 0 : i32
    return %arg0, %c0_i32 : i32, i32
  }
}

</mosaic_0001>

<llo_original>
// kernel: neural_network_forward.1
$region0: #{neural_network_forward.1}
  #allocation0 [shape = 'u32[]', space=smem, size = 0x4, offset = 0x4, fixed_abs, tag = 'smem constant byte address 0x4 - core index']
  #allocation1 [shape = 'u32[144,128]{1,0:T(1,128)}', space=vmem, size = 0x12000, scoped, tag = 'internal scratch']
  %s0 = inlined_call_operand.hbm [shape: f32[8,32], index: 0, kind: input, shape index: {}]
  %s1 = inlined_call_operand.hbm [shape: f32[4,128,128], index: 1, kind: input, shape index: {}]
  %s2 = inlined_call_operand.vmem [shape: f32[4,1,128], index: 2, kind: input, shape index: {}]
  %s3 = inlined_call_operand.vmem [shape: f32[8,128], index: 3, kind: output, shape index: {}]
  %s4 = sld [smem:[#allocation0]]
  $region30: #{neural_network_forward.1} parent=0
    _
  %s6 = ssub.s32 1, %s4
  %s7 = scalar_select 0, %s6, %s4
  $region1: #{neural_network_forward.1} parent=0
    #allocation2 [shape = 'u8[4096]{0}', space=vmem, size = 0x1000, scoped, tag = 'input window, operand 0, single buffered']
    #allocation3 [shape = 's32[1]{0}', space=sflag, size = 0x4, scoped, tag = 'scoped memory for neural_network_forward.1']
    #allocation4 [shape = 'u8[262144]{0}', space=vmem, size = 0x40000, scoped, tag = 'input window, operand 1, single buffered']
    #allocation5 [shape = 's32[1]{0}', space=sflag, size = 0x4, scoped, tag = 'scoped memory for neural_network_forward.1']
    %8 = vsyncpa [#allocation3], 0
    %9 = vsyncpa [#allocation5], 0
    // Predicated region
    $region2: #{neural_network_forward.1} parent=1 // pred_check
      _
    $region3: #{neural_network_forward.1} parent=1 // pred_check_branch
      %11 = sbr.rel (0) target = $region5
    $region4: #{neural_network_forward.1} parent=1 // pred_region
      %s13 = ssub.s32 128, 128
      %14 = vsyncadd [#allocation3], %s13
      %s16 = sshll.u32 [#allocation2], 4
      %s17 = int_to_ptr.vmem [resolvable:$true] %s16
      %19 = dma.hbm_to_vmem [thread:$0]  %s0, 128, %s17, [#allocation3]
    $region5: #{neural_network_forward.1} parent=1 // pred_fallthru
      _
    // Predicated region
    $region6: #{neural_network_forward.1} parent=1 // pred_check
      _
    $region7: #{neural_network_forward.1} parent=1 // pred_check_branch
      %21 = sbr.rel (0) target = $region9
    $region8: #{neural_network_forward.1} parent=1 // pred_region
      %s23 = ssub.s32 8192, 8192
      %24 = vsyncadd [#allocation5], %s23
      %s25 = sshll.u32 [#allocation4], 4
      %s26 = int_to_ptr.vmem [resolvable:$true] %s25
      %31 = dma.hbm_to_vmem [thread:$0]  %s1, 8192, %s26, [#allocation5], 128, 128, 8
    $region9: #{neural_network_forward.1} parent=1 // pred_fallthru
      _
    // Predicated region
    $region10: #{neural_network_forward.1} parent=1 // pred_check
      _
    $region11: #{neural_network_forward.1} parent=1 // pred_check_branch
      %33 = sbr.rel (0) target = $region13
    $region12: #{neural_network_forward.1} parent=1 // pred_region
      _
    $region13: #{neural_network_forward.1} parent=1 // pred_fallthru
      _
    // Predicated region
    $region14: #{neural_network_forward.1} parent=1 // pred_check
      _
    $region15: #{neural_network_forward.1} parent=1 // pred_check_branch
      %35 = sbr.rel (0) target = $region17
    $region16: #{neural_network_forward.1} parent=1 // pred_region
      %36 = dma.done [#allocation3], 128
    $region17: #{neural_network_forward.1} parent=1 // pred_fallthru
      _
    // Predicated region
    $region18: #{neural_network_forward.1} parent=1 // pred_check
      _
    $region19: #{neural_network_forward.1} parent=1 // pred_check_branch
      %38 = sbr.rel (0) target = $region21
    $region20: #{neural_network_forward.1} parent=1 // pred_region
      %39 = dma.done [#allocation5], 8192
    $region21: #{neural_network_forward.1} parent=1 // pred_fallthru
      _
    %v40 = vld [vmem:[#allocation2] sm:$0xff]
    %v41 = vld [vmem:[#allocation4] sm:$0xff]
    %v42 = vld [vmem:[#allocation4 + $0x8] sm:$0xff]
    %v43 = vld [vmem:[#allocation4 + $0x10] sm:$0xff]
    %v44 = vld [vmem:[#allocation4 + $0x18] sm:$0xff]
    %v45 = vld [vmem:[%s2] sm:$0x1]
    %v47 = vlaneseq
    %v48 = vshrl.u32 %v47, 7
    %v49 = vsub.s32 0, %v48
    %v50 = vrot.slane %v45, %v49
    %vm52 = vcmask 261120
    %v54 = vsel %vm52, %v40, 0
    %56 = vmatprep.subr.mxu0 0.0
    %57 = vmatpush1.msra.mxu0 %v41
    %58 = vmatprep.subr.mxu0 0.0
    %59 = vmatpush1.msra.mxu0 %v42
    %60 = vmatprep.subr.mxu0 0.0
    %61 = vmatpush1.msra.mxu0 %v43
    %62 = vmatprep.subr.mxu0 0.0
    %63 = vmatpush1.msra.mxu0 %v44
    %64 = vmatprep.subr.mxu0 0.0
    %65 = vmatpush1.msra.mxu0 0.0
    %66 = vmatprep.subr.mxu0 0.0
    %67 = vmatpush1.msra.mxu0 0.0
    %68 = vmatprep.subr.mxu0 0.0
    %69 = vmatpush1.msra.mxu0 0.0
    %70 = vmatprep.subr.mxu0 0.0
    %71 = vmatpush1.msra.mxu0 0.0
    %72 = vmatprep.subr.mxu0 0.0
    %73 = vmatpush1.msra.mxu0 0.0
    %74 = vmatprep.subr.mxu0 0.0
    %75 = vmatpush1.msra.mxu0 0.0
    %76 = vmatprep.subr.mxu0 0.0
    %77 = vmatpush1.msra.mxu0 0.0
    %78 = vmatprep.subr.mxu0 0.0
    %79 = vmatpush1.msra.mxu0 0.0
    %80 = vmatprep.subr.mxu0 0.0
    %81 = vmatpush1.msra.mxu0 0.0
    %82 = vmatprep.subr.mxu0 0.0
    %83 = vmatpush1.msra.mxu0 0.0
    %84 = vmatprep.subr.mxu0 0.0
    %85 = vmatpush1.msra.mxu0 0.0
    %86 = vmatprep.subr.mxu0 0.0
    %87 = vmatpush1.msra.mxu0 0.0
    %88 = vmatprep.subr.mxu0 0.0
    %89 = vmatpush1.msra.mxu0 0.0
    %90 = vmatprep.subr.mxu0 0.0
    %91 = vmatpush1.msra.mxu0 0.0
    %92 = vmatprep.subr.mxu0 0.0
    %93 = vmatpush1.msra.mxu0 0.0
    %94 = vmatprep.subr.mxu0 0.0
    %95 = vmatpush1.msra.mxu0 0.0
    %96 = vmatprep.subr.mxu0 0.0
    %97 = vmatpush1.msra.mxu0 0.0
    %98 = vmatprep.subr.mxu0 0.0
    %99 = vmatpush1.msra.mxu0 0.0
    %100 = vmatprep.subr.mxu0 0.0
    %101 = vmatpush1.msra.mxu0 0.0
    %102 = vmatprep.subr.mxu0 0.0
    %103 = vmatpush1.msra.mxu0 0.0
    %104 = vmatprep.subr.mxu0 0.0
    %105 = vmatpush1.msra.mxu0 0.0
    %106 = vmatprep.subr.mxu0 0.0
    %107 = vmatpush1.msra.mxu0 0.0
    %108 = vmatprep.subr.mxu0 0.0
    %109 = vmatpush1.msra.mxu0 0.0
    %110 = vmatprep.subr.mxu0 0.0
    %111 = vmatpush1.msra.mxu0 0.0
    %112 = vmatprep.subr.mxu0 0.0
    %113 = vmatpush1.msra.mxu0 0.0
    %114 = vmatprep.subr.mxu0 0.0
    %115 = vmatpush1.msra.mxu0 0.0
    %116 = vmatprep.subr.mxu0 0.0
    %117 = vmatpush1.msra.mxu0 0.0
    %118 = vmatprep.subr.mxu0 0.0
    %119 = vmatpush1.msra.mxu0 0.0
    %120 = vmatprep.mubr.f32.mxu0 0.0
    %121 = vmatmul.mubr.f32.gmra.mrb[0].mxu0 %v54
    %v122 = vpop.f32.mrb[0].mxu0
    %v123 = vadd.f32 %v50, %v122
    %v124 = vpop.f32.mrb[0].mxu0
    %125 = vdwg.mxu0
    %v126 = vmax.f32 %v123, 0.0
    %s127 = scalar_lea.vmem [#allocation4], 128
    %v128 = vld [vmem:[%s127] sm:$0xff]
    %v129 = vld [vmem:[%s127 + $0x8] sm:$0xff]
    %v130 = vld [vmem:[%s127 + $0x10] sm:$0xff]
    %v131 = vld [vmem:[%s127 + $0x18] sm:$0xff]
    %v132 = vld [vmem:[%s127 + $0x20] sm:$0xff]
    %v133 = vld [vmem:[%s127 + $0x28] sm:$0xff]
    %v134 = vld [vmem:[%s127 + $0x30] sm:$0xff]
    %v135 = vld [vmem:[%s127 + $0x38] sm:$0xff]
    %v136 = vld [vmem:[%s127 + $0x40] sm:$0xff]
    %v137 = vld [vmem:[%s127 + $0x48] sm:$0xff]
    %v138 = vld [vmem:[%s127 + $0x50] sm:$0xff]
    %v139 = vld [vmem:[%s127 + $0x58] sm:$0xff]
    %v140 = vld [vmem:[%s127 + $0x60] sm:$0xff]
    %v141 = vld [vmem:[%s127 + $0x68] sm:$0xff]
    %v142 = vld [vmem:[%s127 + $0x70] sm:$0xff]
    %v143 = vld [vmem:[%s127 + $0x78] sm:$0xff]
    %s144 = scalar_lea.vmem %s2, 1
    %v145 = vld [vmem:[%s144] sm:$0x1]
    %v147 = vlaneseq
    %v148 = vshrl.u32 %v147, 7
    %v149 = vsub.s32 0, %v148
    %v150 = vrot.slane %v145, %v149
    %152 = vmatprep.subr.mxu0 0.0
    %153 = vmatpush1.msra.mxu0 %v128
    %154 = vmatprep.subr.mxu0 0.0
    %155 = vmatpush1.msra.mxu0 %v129
    %156 = vmatprep.subr.mxu0 0.0
    %157 = vmatpush1.msra.mxu0 %v130
    %158 = vmatprep.subr.mxu0 0.0
    %159 = vmatpush1.msra.mxu0 %v131
    %160 = vmatprep.subr.mxu0 0.0
    %161 = vmatpush1.msra.mxu0 %v132
    %162 = vmatprep.subr.mxu0 0.0
    %163 = vmatpush1.msra.mxu0 %v133
    %164 = vmatprep.subr.mxu0 0.0
    %165 = vmatpush1.msra.mxu0 %v134
    %166 = vmatprep.subr.mxu0 0.0
    %167 = vmatpush1.msra.mxu0 %v135
    %168 = vmatprep.subr.mxu0 0.0
    %169 = vmatpush1.msra.mxu0 %v136
    %170 = vmatprep.subr.mxu0 0.0
    %171 = vmatpush1.msra.mxu0 %v137
    %172 = vmatprep.subr.mxu0 0.0
    %173 = vmatpush1.msra.mxu0 %v138
    %174 = vmatprep.subr.mxu0 0.0
    %175 = vmatpush1.msra.mxu0 %v139
    %176 = vmatprep.subr.mxu0 0.0
    %177 = vmatpush1.msra.mxu0 %v140
    %178 = vmatprep.subr.mxu0 0.0
    %179 = vmatpush1.msra.mxu0 %v141
    %180 = vmatprep.subr.mxu0 0.0
    %181 = vmatpush1.msra.mxu0 %v142
    %182 = vmatprep.subr.mxu0 0.0
    %183 = vmatpush1.msra.mxu0 %v143
    %184 = vmatprep.subr.mxu0 0.0
    %185 = vmatpush1.msra.mxu0 0.0
    %186 = vmatprep.subr.mxu0 0.0
    %187 = vmatpush1.msra.mxu0 0.0
    %188 = vmatprep.subr.mxu0 0.0
    %189 = vmatpush1.msra.mxu0 0.0
    %190 = vmatprep.subr.mxu0 0.0
    %191 = vmatpush1.msra.mxu0 0.0
    %192 = vmatprep.subr.mxu0 0.0
    %193 = vmatpush1.msra.mxu0 0.0
    %194 = vmatprep.subr.mxu0 0.0
    %195 = vmatpush1.msra.mxu0 0.0
    %196 = vmatprep.subr.mxu0 0.0
    %197 = vmatpush1.msra.mxu0 0.0
    %198 = vmatprep.subr.mxu0 0.0
    %199 = vmatpush1.msra.mxu0 0.0
    %200 = vmatprep.subr.mxu0 0.0
    %201 = vmatpush1.msra.mxu0 0.0
    %202 = vmatprep.subr.mxu0 0.0
    %203 = vmatpush1.msra.mxu0 0.0
    %204 = vmatprep.subr.mxu0 0.0
    %205 = vmatpush1.msra.mxu0 0.0
    %206 = vmatprep.subr.mxu0 0.0
    %207 = vmatpush1.msra.mxu0 0.0
    %208 = vmatprep.subr.mxu0 0.0
    %209 = vmatpush1.msra.mxu0 0.0
    %210 = vmatprep.subr.mxu0 0.0
    %211 = vmatpush1.msra.mxu0 0.0
    %212 = vmatprep.subr.mxu0 0.0
    %213 = vmatpush1.msra.mxu0 0.0
    %214 = vmatprep.subr.mxu0 0.0
    %215 = vmatpush1.msra.mxu0 0.0
    %216 = vmatprep.mubr.f32.mxu0 0.0
    %217 = vmatmul.mubr.f32.gmra.mrb[0].mxu0 %v126
    %v218 = vpop.f32.mrb[0].mxu0
    %v219 = vadd.f32 %v150, %v218
    %v220 = vpop.f32.mrb[0].mxu0
    %221 = vdwg.mxu0
    %v222 = vmax.f32 %v219, 0.0
    %s223 = scalar_lea.vmem [#allocation4], 256
    %v224 = vld [vmem:[%s223] sm:$0xff]
    %v225 = vld [vmem:[%s223 + $0x8] sm:$0xff]
    %v226 = vld [vmem:[%s223 + $0x10] sm:$0xff]
    %v227 = vld [vmem:[%s223 + $0x18] sm:$0xff]
    %v228 = vld [vmem:[%s223 + $0x20] sm:$0xff]
    %v229 = vld [vmem:[%s223 + $0x28] sm:$0xff]
    %v230 = vld [vmem:[%s223 + $0x30] sm:$0xff]
    %v231 = vld [vmem:[%s223 + $0x38] sm:$0xff]
    %v232 = vld [vmem:[%s223 + $0x40] sm:$0xff]
    %v233 = vld [vmem:[%s223 + $0x48] sm:$0xff]
    %v234 = vld [vmem:[%s223 + $0x50] sm:$0xff]
    %v235 = vld [vmem:[%s223 + $0x58] sm:$0xff]
    %v236 = vld [vmem:[%s223 + $0x60] sm:$0xff]
    %v237 = vld [vmem:[%s223 + $0x68] sm:$0xff]
    %v238 = vld [vmem:[%s223 + $0x70] sm:$0xff]
    %v239 = vld [vmem:[%s223 + $0x78] sm:$0xff]
    %s240 = scalar_lea.vmem %s2, 2
    %v241 = vld [vmem:[%s240] sm:$0x1]
    %v243 = vlaneseq
    %v244 = vshrl.u32 %v243, 7
    %v245 = vsub.s32 0, %v244
    %v246 = vrot.slane %v241, %v245
    %248 = vmatprep.subr.mxu0 0.0
    %249 = vmatpush1.msra.mxu0 %v224
    %250 = vmatprep.subr.mxu0 0.0
    %251 = vmatpush1.msra.mxu0 %v225
    %252 = vmatprep.subr.mxu0 0.0
    %253 = vmatpush1.msra.mxu0 %v226
    %254 = vmatprep.subr.mxu0 0.0
    %255 = vmatpush1.msra.mxu0 %v227
    %256 = vmatprep.subr.mxu0 0.0
    %257 = vmatpush1.msra.mxu0 %v228
    %258 = vmatprep.subr.mxu0 0.0
    %259 = vmatpush1.msra.mxu0 %v229
    %260 = vmatprep.subr.mxu0 0.0
    %261 = vmatpush1.msra.mxu0 %v230
    %262 = vmatprep.subr.mxu0 0.0
    %263 = vmatpush1.msra.mxu0 %v231
    %264 = vmatprep.subr.mxu0 0.0
    %265 = vmatpush1.msra.mxu0 %v232
    %266 = vmatprep.subr.mxu0 0.0
    %267 = vmatpush1.msra.mxu0 %v233
    %268 = vmatprep.subr.mxu0 0.0
    %269 = vmatpush1.msra.mxu0 %v234
    %270 = vmatprep.subr.mxu0 0.0
    %271 = vmatpush1.msra.mxu0 %v235
    %272 = vmatprep.subr.mxu0 0.0
    %273 = vmatpush1.msra.mxu0 %v236
    %274 = vmatprep.subr.mxu0 0.0
    %275 = vmatpush1.msra.mxu0 %v237
    %276 = vmatprep.subr.mxu0 0.0
    %277 = vmatpush1.msra.mxu0 %v238
    %278 = vmatprep.subr.mxu0 0.0
    %279 = vmatpush1.msra.mxu0 %v239
    %280 = vmatprep.subr.mxu0 0.0
    %281 = vmatpush1.msra.mxu0 0.0
    %282 = vmatprep.subr.mxu0 0.0
    %283 = vmatpush1.msra.mxu0 0.0
    %284 = vmatprep.subr.mxu0 0.0
    %285 = vmatpush1.msra.mxu0 0.0
    %286 = vmatprep.subr.mxu0 0.0
    %287 = vmatpush1.msra.mxu0 0.0
    %288 = vmatprep.subr.mxu0 0.0
    %289 = vmatpush1.msra.mxu0 0.0
    %290 = vmatprep.subr.mxu0 0.0
    %291 = vmatpush1.msra.mxu0 0.0
    %292 = vmatprep.subr.mxu0 0.0
    %293 = vmatpush1.msra.mxu0 0.0
    %294 = vmatprep.subr.mxu0 0.0
    %295 = vmatpush1.msra.mxu0 0.0
    %296 = vmatprep.subr.mxu0 0.0
    %297 = vmatpush1.msra.mxu0 0.0
    %298 = vmatprep.subr.mxu0 0.0
    %299 = vmatpush1.msra.mxu0 0.0
    %300 = vmatprep.subr.mxu0 0.0
    %301 = vmatpush1.msra.mxu0 0.0
    %302 = vmatprep.subr.mxu0 0.0
    %303 = vmatpush1.msra.mxu0 0.0
    %304 = vmatprep.subr.mxu0 0.0
    %305 = vmatpush1.msra.mxu0 0.0
    %306 = vmatprep.subr.mxu0 0.0
    %307 = vmatpush1.msra.mxu0 0.0
    %308 = vmatprep.subr.mxu0 0.0
    %309 = vmatpush1.msra.mxu0 0.0
    %310 = vmatprep.subr.mxu0 0.0
    %311 = vmatpush1.msra.mxu0 0.0
    %312 = vmatprep.mubr.f32.mxu0 0.0
    %313 = vmatmul.mubr.f32.gmra.mrb[0].mxu0 %v222
    %v314 = vpop.f32.mrb[0].mxu0
    %v315 = vadd.f32 %v246, %v314
    %v316 = vpop.f32.mrb[0].mxu0
    %317 = vdwg.mxu0
    %v318 = vmax.f32 %v315, 0.0
    %s319 = scalar_lea.vmem [#allocation4], 384
    %v320 = vld [vmem:[%s319] sm:$0xff]
    %v321 = vld [vmem:[%s319 + $0x8] sm:$0xff]
    %v322 = vld [vmem:[%s319 + $0x10] sm:$0xff]
    %v323 = vld [vmem:[%s319 + $0x18] sm:$0xff]
    %v324 = vld [vmem:[%s319 + $0x20] sm:$0xff]
    %v325 = vld [vmem:[%s319 + $0x28] sm:$0xff]
    %v326 = vld [vmem:[%s319 + $0x30] sm:$0xff]
    %v327 = vld [vmem:[%s319 + $0x38] sm:$0xff]
    %v328 = vld [vmem:[%s319 + $0x40] sm:$0xff]
    %v329 = vld [vmem:[%s319 + $0x48] sm:$0xff]
    %v330 = vld [vmem:[%s319 + $0x50] sm:$0xff]
    %v331 = vld [vmem:[%s319 + $0x58] sm:$0xff]
    %v332 = vld [vmem:[%s319 + $0x60] sm:$0xff]
    %v333 = vld [vmem:[%s319 + $0x68] sm:$0xff]
    %v334 = vld [vmem:[%s319 + $0x70] sm:$0xff]
    %v335 = vld [vmem:[%s319 + $0x78] sm:$0xff]
    %s336 = scalar_lea.vmem %s2, 3
    %v337 = vld [vmem:[%s336] sm:$0x1]
    %v339 = vlaneseq
    %v340 = vshrl.u32 %v339, 7
    %v341 = vsub.s32 0, %v340
    %v342 = vrot.slane %v337, %v341
    %344 = vmatprep.subr.mxu0 0.0
    %345 = vmatpush1.msra.mxu0 %v320
    %346 = vmatprep.subr.mxu0 0.0
    %347 = vmatpush1.msra.mxu0 %v321
    %348 = vmatprep.subr.mxu0 0.0
    %349 = vmatpush1.msra.mxu0 %v322
    %350 = vmatprep.subr.mxu0 0.0
    %351 = vmatpush1.msra.mxu0 %v323
    %352 = vmatprep.subr.mxu0 0.0
    %353 = vmatpush1.msra.mxu0 %v324
    %354 = vmatprep.subr.mxu0 0.0
    %355 = vmatpush1.msra.mxu0 %v325
    %356 = vmatprep.subr.mxu0 0.0
    %357 = vmatpush1.msra.mxu0 %v326
    %358 = vmatprep.subr.mxu0 0.0
    %359 = vmatpush1.msra.mxu0 %v327
    %360 = vmatprep.subr.mxu0 0.0
    %361 = vmatpush1.msra.mxu0 %v328
    %362 = vmatprep.subr.mxu0 0.0
    %363 = vmatpush1.msra.mxu0 %v329
    %364 = vmatprep.subr.mxu0 0.0
    %365 = vmatpush1.msra.mxu0 %v330
    %366 = vmatprep.subr.mxu0 0.0
    %367 = vmatpush1.msra.mxu0 %v331
    %368 = vmatprep.subr.mxu0 0.0
    %369 = vmatpush1.msra.mxu0 %v332
    %370 = vmatprep.subr.mxu0 0.0
    %371 = vmatpush1.msra.mxu0 %v333
    %372 = vmatprep.subr.mxu0 0.0
    %373 = vmatpush1.msra.mxu0 %v334
    %374 = vmatprep.subr.mxu0 0.0
    %375 = vmatpush1.msra.mxu0 %v335
    %376 = vmatprep.subr.mxu0 0.0
    %377 = vmatpush1.msra.mxu0 0.0
    %378 = vmatprep.subr.mxu0 0.0
    %379 = vmatpush1.msra.mxu0 0.0
    %380 = vmatprep.subr.mxu0 0.0
    %381 = vmatpush1.msra.mxu0 0.0
    %382 = vmatprep.subr.mxu0 0.0
    %383 = vmatpush1.msra.mxu0 0.0
    %384 = vmatprep.subr.mxu0 0.0
    %385 = vmatpush1.msra.mxu0 0.0
    %386 = vmatprep.subr.mxu0 0.0
    %387 = vmatpush1.msra.mxu0 0.0
    %388 = vmatprep.subr.mxu0 0.0
    %389 = vmatpush1.msra.mxu0 0.0
    %390 = vmatprep.subr.mxu0 0.0
    %391 = vmatpush1.msra.mxu0 0.0
    %392 = vmatprep.subr.mxu0 0.0
    %393 = vmatpush1.msra.mxu0 0.0
    %394 = vmatprep.subr.mxu0 0.0
    %395 = vmatpush1.msra.mxu0 0.0
    %396 = vmatprep.subr.mxu0 0.0
    %397 = vmatpush1.msra.mxu0 0.0
    %398 = vmatprep.subr.mxu0 0.0
    %399 = vmatpush1.msra.mxu0 0.0
    %400 = vmatprep.subr.mxu0 0.0
    %401 = vmatpush1.msra.mxu0 0.0
    %402 = vmatprep.subr.mxu0 0.0
    %403 = vmatpush1.msra.mxu0 0.0
    %404 = vmatprep.subr.mxu0 0.0
    %405 = vmatpush1.msra.mxu0 0.0
    %406 = vmatprep.subr.mxu0 0.0
    %407 = vmatpush1.msra.mxu0 0.0
    %408 = vmatprep.mubr.f32.mxu0 0.0
    %409 = vmatmul.mubr.f32.gmra.mrb[0].mxu0 %v318
    %v410 = vpop.f32.mrb[0].mxu0
    %v411 = vadd.f32 %v342, %v410
    %v412 = vpop.f32.mrb[0].mxu0
    %413 = vdwg.mxu0
    %v414 = vmul.f32 %v411, 0.5
    %v415 = vtanh.pop %v414
    %v416 = vadd.f32 %v415, 1.0
    %v417 = vmul.f32 %v416, 0.5
    %418 = vst [vmem:[%s3] sm:$0xff] %v417
    // Predicated region
    $region22: #{neural_network_forward.1} parent=1 // pred_check
      _
    $region23: #{neural_network_forward.1} parent=1 // pred_check_branch
      %420 = sbr.rel (0) target = $region25
    $region24: #{neural_network_forward.1} parent=1 // pred_region
      _
    $region25: #{neural_network_forward.1} parent=1 // pred_fallthru
      _
    // Predicated region
    $region26: #{neural_network_forward.1} parent=1 // pred_check
      _
    $region27: #{neural_network_forward.1} parent=1 // pred_check_branch
      %422 = sbr.rel (0) target = $region29
    $region28: #{neural_network_forward.1} parent=1 // pred_region
      _
    $region29: #{neural_network_forward.1} parent=1 // pred_fallthru
      _
    %423 = vsyncpa [#allocation3], 1
    %424 = vsyncpa [#allocation5], 1

</llo_original>
